<compile_context>
chip_gen: v6e
topology: v6e:2x2x1
jax: 0.10.0
libtpu: 0.0.40
codegen_flags: <defaults>
</compile_context>

<pallas_src>
import jax
import jax.numpy as jnp
from jax.experimental import pallas as pl
from jax.experimental.pallas import tpu as pltpu


def _identity_copy_kernel(x_ref, o_ref):
    # Pure tile copy (identity forward).
    o_ref[...] = x_ref[...]


def _sublane_multiple(dtype) -> int:
    # f32 -> 8 rows/vreg, bf16 -> 16, int8/fp8 -> 32 (sub-32-bit packs sublanes).
    itemsize = max(jnp.dtype(dtype).itemsize, 1)
    return max(8, 8 * (4 // itemsize))


def identity_map(x: jax.Array, *args, use_pallas: bool = True, **kwargs) -> jax.Array:
    """Pallas implementation of IdentityMap.forward: returns x unchanged.

    Default fast path: identity is free, so when a Pallas op boundary is not
    required (or a lane-dense view cannot be formed) we simply return x.
    """
    if not use_pallas:
        return x
    if x.ndim == 0 or x.size == 0:
        # Scalars / empty arrays: nothing to copy.
        return x

    total = x.size
    if total % 128 != 0:
        # Can't present a lane-dense (multiple-of-128) last dim; identity needs
        # no compute, so return the input unchanged rather than run a masked,
        # bandwidth-wasting copy.
        return x

    # ---- Lane-dense 2-D view: last dim = largest 128*k (k<=16) dividing total.
    lane = 128
    for k in (16, 8, 4, 2):
        if total % (128 * k) == 0:
            lane = 128 * k
            break
    rows = total // lane
    x2 = x.reshape(rows, lane)

    # ---- Block sizing by byte budget (~4 MiB/block).  With double-buffered
    # input + output that is ~16 MiB of VMEM — safe on every generation once
    # the scoped limit is raised, and small enough for v7x's 64 MiB physical.
    itemsize = jnp.dtype(x.dtype).itemsize
    sub = _sublane_multiple(x.dtype)
    budget_bytes = 4 * 1024 * 1024
    tile_rows = max(sub, (budget_bytes // (lane * itemsize)) // sub * sub)
    if tile_rows >= rows:
        tile_rows = rows  # full-extent block is always legal
    grid = (pl.cdiv(rows, tile_rows),)

    out = pl.pallas_call(
        _identity_copy_kernel,
        out_shape=jax.ShapeDtypeStruct((rows, lane), x2.dtype),
        grid=grid,
        in_specs=[pl.BlockSpec((tile_rows, lane), lambda i: (i, 0))],
        out_specs=pl.BlockSpec((tile_rows, lane), lambda i: (i, 0)),
        # Alias input buffer to output: no fresh HBM allocation for a no-op.
        input_output_aliases={0: 0},
        compiler_params=pltpu.CompilerParams(
            dimension_semantics=("parallel",),   # lets v7x split across 2 TCs
            vmem_limit_bytes=64 << 20,           # headroom above v5e's 16 MiB default
        ),
    )(x2)

    return out.reshape(x.shape)


def identity_map_config():
    # Mirrors the PyTorch `config` property (no parameters, no compute).
    return {"mm_projector_type": "identity"}


if __name__ == "__main__":
    key = jax.random.PRNGKey(0)

    # Projector-style input: batch=2, seq=8, hidden=32 (total divisible by 128
    # -> lane-dense Pallas path is exercised).
    x = jax.random.normal(key, (2, 8, 32), dtype=jnp.float32)
    y = identity_map(x, use_pallas=True)
    jax.block_until_ready(y)
    assert y.shape == x.shape and y.dtype == x.dtype
    assert bool(jnp.all(y == x))

    # Fast path (true no-op) and odd-size fallback both stay bit-exact.
    y_fast = identity_map(x, use_pallas=False)
    assert bool(jnp.all(y_fast == x))
    x_odd = jax.random.normal(jax.random.PRNGKey(1), (3, 5, 7), dtype=jnp.float32)
    y_odd = identity_map(x_odd)
    assert bool(jnp.all(y_odd == x_odd))

    assert identity_map_config() == {"mm_projector_type": "identity"}
    print("KERNEL_OK")
</pallas_src>

<mosaic_0001>
module attributes {stable_mosaic.version = 11 : i64} {
  func.func @_identity_copy_kernel(%arg0: i32, %arg1: memref<1x512xf32, #tpu.memory_space<vmem>>, %arg2: memref<1x512xf32, #tpu.memory_space<vmem>>) attributes {dimension_semantics = [#tpu.dimension_semantics<parallel>], iteration_bounds = array<i64: 1>, scalar_prefetch = 0 : i64, scratch_operands = 0 : i64, tpu.core_type = #tpu.core_type<tc>, window_params = [{transform_indices = @transform_0, window_bounds = array<i64: 1, 512>}, {transform_indices = @transform_1, window_bounds = array<i64: 1, 512>}]} {
    %c0 = arith.constant 0 : index
    %c0_0 = arith.constant 0 : index
    %0 = vector.load %arg1[%c0, %c0_0] : memref<1x512xf32, #tpu.memory_space<vmem>>, vector<1x512xf32>
    %c0_1 = arith.constant 0 : index
    %c0_2 = arith.constant 0 : index
    %1 = vector.load %arg2[%c0_1, %c0_2] : memref<1x512xf32, #tpu.memory_space<vmem>>, vector<1x512xf32>
    tpu.vector_store %arg2[%c0_1, %c0_2], %0 {strides = array<i32>} : memref<1x512xf32, #tpu.memory_space<vmem>>, vector<1x512xf32>,
    return
  }
  func.func @transform_0(%arg0: i32) -> (i32, i32) {
    %c0_i32 = arith.constant 0 : i32
    %c0_i32_0 = arith.constant 0 : i32
    return %arg0, %c0_i32 : i32, i32
  }
  func.func @transform_1(%arg0: i32) -> (i32, i32) {
    %c0_i32 = arith.constant 0 : i32
    %c0_i32_0 = arith.constant 0 : i32
    return %arg0, %c0_i32 : i32, i32
  }
}

</mosaic_0001>

<llo_original>
// kernel: tpu_custom_call.1
$region0: #{tpu_custom_call.1}
  #allocation0 [shape = 'u32[]', space=smem, size = 0x4, offset = 0x4, fixed_abs, tag = 'smem constant byte address 0x4 - core index']
  #allocation1 [shape = 'u32[144,128]{1,0:T(1,128)}', space=vmem, size = 0x12000, scoped, tag = 'internal scratch']
  %s0 = inlined_call_operand.hbm [shape: f32[1,512], index: 0, kind: input, shape index: {}, may-alias: {0,1}]
  %s1 = inlined_call_operand.hbm [shape: f32[1,512], index: 1, kind: output, shape index: {}, may-alias: {0,1}]
  %s2 = sld [smem:[#allocation0]]
  $region18: #{tpu_custom_call.1} parent=0
    _
  %s4 = ssub.s32 1, %s2
  %s5 = scalar_select 0, %s4, %s2
  $region1: #{tpu_custom_call.1} parent=0
    #allocation2 [shape = 'u8[2048]{0}', space=vmem, size = 0x800, scoped, tag = 'input window, operand 0, single buffered']
    #allocation3 [shape = 's32[1]{0}', space=sflag, size = 0x4, scoped, tag = 'scoped memory for tpu_custom_call.1']
    #allocation4 [shape = 's32[1]{0}', space=sflag, size = 0x4, scoped, tag = 'scoped memory for tpu_custom_call.1']
    #allocation5 [shape = 'u8[2048]{0}', space=vmem, size = 0x800, scoped, tag = 'output window, operand 0, single buffered']
    %6 = vsyncpa [#allocation3], 0
    %7 = vsyncpa [#allocation4], 0
    // Predicated region
    $region2: #{tpu_custom_call.1} parent=1 // pred_check
      _
    $region3: #{tpu_custom_call.1} parent=1 // pred_check_branch
      %9 = sbr.rel (0) target = $region5
    $region4: #{tpu_custom_call.1} parent=1 // pred_region
      %s11 = ssub.s32 64, 64
      %12 = vsyncadd [#allocation3], %s11
      %s14 = sshll.u32 [#allocation2], 4
      %s15 = int_to_ptr.vmem [resolvable:$true] %s14
      %17 = dma.hbm_to_vmem [thread:$0]  %s0, 64, %s15, [#allocation3]
    $region5: #{tpu_custom_call.1} parent=1 // pred_fallthru
      _
    // Predicated region
    $region6: #{tpu_custom_call.1} parent=1 // pred_check
      _
    $region7: #{tpu_custom_call.1} parent=1 // pred_check_branch
      %19 = sbr.rel (0) target = $region9
    $region8: #{tpu_custom_call.1} parent=1 // pred_region
      %20 = dma.done [#allocation3], 64
    $region9: #{tpu_custom_call.1} parent=1 // pred_fallthru
      _
    %v21 = vld [vmem:[#allocation2] sm:$0xf]
    %v22 = vlaneseq
    %vm23 = vcmp.ge.s32.totalorder %v22, 0
    %vm24 = vcmp.lt.s32.totalorder %v22, 512
    %vm25 = vmand %vm23, %vm24
    %26 = vst.msk [vmem:[#allocation5] sm:$0xf] %vm25, %v21
    // Predicated region
    $region10: #{tpu_custom_call.1} parent=1 // pred_check
      _
    $region11: #{tpu_custom_call.1} parent=1 // pred_check_branch
      %28 = sbr.rel (0) target = $region13
    $region12: #{tpu_custom_call.1} parent=1 // pred_region
      %s30 = ssub.s32 64, 64
      %31 = vsyncadd [#allocation4], %s30
      %s33 = sshll.u32 [#allocation5], 4
      %s34 = int_to_ptr.vmem [resolvable:$true] %s33
      %36 = dma.vmem_to_hbm [thread:$0]  %s34, 64, %s1, [#allocation4]
    $region13: #{tpu_custom_call.1} parent=1 // pred_fallthru
      _
    // Predicated region
    $region14: #{tpu_custom_call.1} parent=1 // pred_check
      _
    $region15: #{tpu_custom_call.1} parent=1 // pred_check_branch
      %38 = sbr.rel (0) target = $region17
    $region16: #{tpu_custom_call.1} parent=1 // pred_region
      %39 = dma.done [#allocation4], 64
    $region17: #{tpu_custom_call.1} parent=1 // pred_fallthru
      _
    %40 = vsyncpa [#allocation3], 1
    %41 = vsyncpa [#allocation4], 1

</llo_original>
